<compile_context>
chip_gen: v7x
topology: tpu7x:2x2x1
jax: 0.10.0
libtpu: 0.0.40
codegen_flags: <defaults>
</compile_context>

<pallas_src>
import jax
import jax.numpy as jnp
from jax.experimental import pallas as pl
from jax.experimental.pallas import tpu as pltpu


def _round_up(x, m):
    return ((x + m - 1) // m) * m


def _make_tdnn_kernel(context_len, subsampling_factor, n_rows):
    """Kernel for one batch element.

    x_ref : (sf, Tq, D)      bf16   x_ref[r, q, :]  == x[b, q*sf + r, :]
    w_ref : (l, D, O_pad)    bf16   w_ref[i]        == W.T[i*D:(i+1)*D, :]
    b_ref : (1, O_pad)       f32
    o_ref : (n_rows, O_pad)  f32    o_ref[j, :]     == y[b, j, :]
    """
    sf = subsampling_factor

    def kernel(x_ref, w_ref, b_ref, o_ref):
        acc = None
        # context_len is a tiny compile-time constant (typically 1-3): a static
        # Python loop keeps everything statically sliced and fully visible to
        # the scheduler.  No scratch accumulator / pl.when needed.
        for i in range(context_len):
            qi, ri = divmod(i, sf)
            # spliced row j, column block i  == x[b, j*sf + i, :]
            #                                == x_ref[ri, j + qi, :]
            xi = x_ref[ri, qi:qi + n_rows, :]                 # (n_rows, D) bf16
            part = jnp.dot(xi, w_ref[i],
                           preferred_element_type=jnp.float32)
            acc = part if acc is None else acc + part
        o_ref[...] = acc + b_ref[...]

    return kernel


class TDNNPallas:
    """JAX/Pallas re-implementation of the TDNN module's forward pass."""

    def __init__(self, feat_dim, output_dim, context_len=1,
                 subsampling_factor=1, key=None):
        self.feat_dim = int(feat_dim)
        self.output_dim = int(output_dim)
        self.context_len = int(context_len)
        self.subsampling_factor = int(subsampling_factor)
        if key is None:
            key = jax.random.PRNGKey(0)
        kw, kb = jax.random.split(key)
        in_dim = self.feat_dim * self.context_len
        # NaturalAffineTransform holds weight (output_dim, in_dim) and bias
        # (output_dim); forward is a plain affine transform.
        w = 0.1 * jax.random.normal(kw, (self.output_dim, in_dim), jnp.float32)
        self.w = jnp.transpose(w)                      # (in_dim, output_dim) f32 master
        self.b = 0.1 * jax.random.normal(kb, (1, self.output_dim), jnp.float32)

        # Pad O to a multiple of 256 (full MXU N-dim on v6e/v7x, lane-dense
        # stores); reshape W.T into per-context (D, O_pad) slabs for the
        # fused-splice kernel.  The whole weight stays VMEM-resident.
        self.o_pad = _round_up(self.output_dim, 256)
        pad_o = self.o_pad - self.output_dim
        w_resh = self.w.reshape(self.context_len, self.feat_dim, self.output_dim)
        self.w_kern = jnp.pad(
            w_resh, ((0, 0), (0, 0), (0, pad_o))).astype(jnp.bfloat16)
        self.b_kern = jnp.pad(self.b, ((0, 0), (0, pad_o)))   # f32 (1, O_pad)

    def __call__(self, x):
        mb, T, D = x.shape
        assert D == self.feat_dim
        l = self.context_len
        sf = self.subsampling_factor
        N = T - l + 1
        assert N >= 1, "sequence too short for context_len"
        n_sub = (N + sf - 1) // sf                 # rows after ::sf subsampling
        n_rows = _round_up(n_sub, 8)               # sublane-aligned output rows
        q_max = (l - 1) // sf
        tq = max(-(-T // sf), q_max + n_rows)      # per-phase time extent
        t_pad = tq * sf

        # bf16 *before* any materialization; zero-pad T (only padded output
        # rows, sliced off below, ever read the padded region).
        xb = x.astype(jnp.bfloat16)
        if t_pad != T:
            xb = jnp.pad(xb, ((0, 0), (0, t_pad - T), (0, 0)))
        # Phase-major layout: x4[b, r, q, :] = x[b, q*sf + r, :].  For sf == 1
        # this is a free reshape; for sf > 1 it is one x-sized bf16 copy (XLA
        # fuses it with the cast/pad), far cheaper than the old spliced slab,
        # and it keeps every in-kernel slice contiguous (no strided access).
        x4 = xb.reshape(mb, tq, sf, D).transpose(0, 2, 1, 3)  # (mb, sf, tq, D)

        # Per-step VMEM footprint (x/out double-buffered, weight counted x2
        # conservatively, bias).  48 MiB cap is safe on v7x (64 MiB physical).
        vmem_need = (2 * sf * tq * D * 2
                     + 2 * l * D * self.o_pad * 2
                     + 2 * n_rows * self.o_pad * 4
                     + 2 * self.o_pad * 4)
        # TODO(synk): add a row-tiled / K-tiled fallback for configs exceeding
        # this budget (very long T combined with very large output_dim).
        assert vmem_need <= 44 * 1024 * 1024, (
            f"per-step VMEM footprint {vmem_need} B exceeds budget; "
            "needs a tiled fallback")

        kernel = _make_tdnn_kernel(l, sf, n_rows)
        cost = pl.CostEstimate(
            flops=2 * mb * n_rows * D * l * self.o_pad,
            transcendentals=0,
            bytes_accessed=(x4.size * 2 + self.w_kern.size * 2
                            + self.b_kern.size * 4
                            + mb * n_rows * self.o_pad * 4),
        )
        y = pl.pallas_call(
            kernel,
            out_shape=jax.ShapeDtypeStruct((mb, n_rows, self.o_pad), jnp.float32),
            grid_spec=pltpu.PrefetchScalarGridSpec(
                num_scalar_prefetch=0,
                grid=(mb,),                      # >= 2 in practice -> megacore
                in_specs=[
                    # per-batch activations (the only block that moves)
                    pl.BlockSpec((None, sf, tq, D), lambda b: (b, 0, 0, 0)),
                    # full weight, VMEM-resident across the whole grid
                    pl.BlockSpec((l, D, self.o_pad), lambda b: (0, 0, 0)),
                    # bias, VMEM-resident
                    pl.BlockSpec((1, self.o_pad), lambda b: (0, 0)),
                ],
                out_specs=pl.BlockSpec((None, n_rows, self.o_pad),
                                       lambda b: (b, 0, 0)),
            ),
            compiler_params=pltpu.CompilerParams(
                dimension_semantics=("parallel",),
                vmem_limit_bytes=48 * 1024 * 1024,
            ),
            cost_estimate=cost,
        )(x4, self.w_kern, self.b_kern)

        # Slice away padded rows/columns (kept f32 for parity with PyTorch).
        return y[:, :n_sub, :self.output_dim]


def _reference(x, w, b, context_len, sf, bf16):
    """Pure-JAX reference of the original splice -> subsample -> affine."""
    mb, T, D = x.shape
    N = T - context_len + 1
    spliced = jnp.concatenate(
        [x[:, i:i + N, :] for i in range(context_len)], axis=-1)
    spliced = spliced[:, ::sf, :]
    if bf16:
        return jnp.dot(spliced.astype(jnp.bfloat16), w.astype(jnp.bfloat16),
                       preferred_element_type=jnp.float32) + b
    return spliced @ w + b


if __name__ == "__main__":
    key = jax.random.PRNGKey(0)
    k_in1, k_par1, k_in2, k_par2 = jax.random.split(key, 4)

    # Config 1: subsampled layer (sf > 1 path).
    mb, T, D = 2, 16, 8
    model1 = TDNNPallas(feat_dim=D, output_dim=32, context_len=3,
                        subsampling_factor=3, key=k_par1)
    x1 = jax.random.normal(k_in1, (mb, T, D), dtype=jnp.float32)
    y1 = jax.block_until_ready(model1(x1))
    y1_ref_bf16 = _reference(x1, model1.w, model1.b, 3, 3, bf16=True)
    y1_ref_f32 = _reference(x1, model1.w, model1.b, 3, 3, bf16=False)
    assert y1.shape == y1_ref_f32.shape
    assert jnp.allclose(y1, y1_ref_bf16, atol=2e-3, rtol=2e-3)
    assert jnp.allclose(y1, y1_ref_f32, atol=5e-2, rtol=5e-2)

    # Config 2: no subsampling (sf == 1 path, reshape is free).
    model2 = TDNNPallas(feat_dim=D, output_dim=40, context_len=3,
                        subsampling_factor=1, key=k_par2)
    x2 = jax.random.normal(k_in2, (mb, T, D), dtype=jnp.float32)
    y2 = jax.block_until_ready(model2(x2))
    y2_ref_bf16 = _reference(x2, model2.w, model2.b, 3, 1, bf16=True)
    y2_ref_f32 = _reference(x2, model2.w, model2.b, 3, 1, bf16=False)
    assert y2.shape == y2_ref_f32.shape
    assert jnp.allclose(y2, y2_ref_bf16, atol=2e-3, rtol=2e-3)
    assert jnp.allclose(y2, y2_ref_f32, atol=5e-2, rtol=5e-2)

    print("KERNEL_OK")
</pallas_src>

<mosaic_0001>
module attributes {stable_mosaic.version = 11 : i64} {
  func.func @kernel(%arg0: i32, %arg1: memref<1x3x8x8xbf16, #tpu.memory_space<vmem>>, %arg2: memref<3x8x256xbf16, #tpu.memory_space<vmem>>, %arg3: memref<1x256xf32, #tpu.memory_space<vmem>>, %arg4: memref<1x8x256xf32, #tpu.memory_space<vmem>>) attributes {dimension_semantics = [#tpu.dimension_semantics<parallel>], iteration_bounds = array<i64: 2>, scalar_prefetch = 0 : i64, scratch_operands = 0 : i64, tpu.core_type = #tpu.core_type<tc>, window_params = [{transform_indices = @transform_0, window_bounds = array<i64: 1, 3, 8, 8>}, {pipeline_mode = #tpu.pipeline_mode<synchronous>, transform_indices = @transform_1, window_bounds = array<i64: 3, 8, 256>}, {pipeline_mode = #tpu.pipeline_mode<synchronous>, transform_indices = @transform_2, window_bounds = array<i64: 1, 256>}, {transform_indices = @transform_3, window_bounds = array<i64: 1, 8, 256>}]} {
    %c0 = arith.constant 0 : index
    %c0_0 = arith.constant 0 : index
    %c0_1 = arith.constant 0 : index
    %c0_2 = arith.constant 0 : index
    %0 = vector.load %arg1[%c0, %c0_0, %c0_1, %c0_2] : memref<1x3x8x8xbf16, #tpu.memory_space<vmem>>, vector<1x1x8x8xbf16>
    %1 = vector.shape_cast %0 : vector<1x1x8x8xbf16> to vector<8x8xbf16>
    %c0_3 = arith.constant 0 : index
    %c0_4 = arith.constant 0 : index
    %c0_5 = arith.constant 0 : index
    %2 = vector.load %arg2[%c0_3, %c0_4, %c0_5] : memref<3x8x256xbf16, #tpu.memory_space<vmem>>, vector<1x8x256xbf16>
    %3 = vector.shape_cast %2 : vector<1x8x256xbf16> to vector<8x256xbf16>
    %cst = arith.constant dense<0.000000e+00> : vector<8x256xf32>
    %4 = tpu.matmul %1, %3, %cst {dimension_numbers = #tpu.dot_dimension_numbers<[1], [0], [0], [1], [0, 0, 1, 1], [], []>} : vector<8x8xbf16>, vector<8x256xbf16>, vector<8x256xf32> -> vector<8x256xf32>
    %c0_6 = arith.constant 0 : index
    %c1 = arith.constant 1 : index
    %c0_7 = arith.constant 0 : index
    %c0_8 = arith.constant 0 : index
    %5 = vector.load %arg1[%c0_6, %c1, %c0_7, %c0_8] : memref<1x3x8x8xbf16, #tpu.memory_space<vmem>>, vector<1x1x8x8xbf16>
    %6 = vector.shape_cast %5 : vector<1x1x8x8xbf16> to vector<8x8xbf16>
    %c1_9 = arith.constant 1 : index
    %c0_10 = arith.constant 0 : index
    %c0_11 = arith.constant 0 : index
    %7 = vector.load %arg2[%c1_9, %c0_10, %c0_11] : memref<3x8x256xbf16, #tpu.memory_space<vmem>>, vector<1x8x256xbf16>
    %8 = vector.shape_cast %7 : vector<1x8x256xbf16> to vector<8x256xbf16>
    %cst_12 = arith.constant dense<0.000000e+00> : vector<8x256xf32>
    %9 = tpu.matmul %6, %8, %cst_12 {dimension_numbers = #tpu.dot_dimension_numbers<[1], [0], [0], [1], [0, 0, 1, 1], [], []>} : vector<8x8xbf16>, vector<8x256xbf16>, vector<8x256xf32> -> vector<8x256xf32>
    %10 = arith.addf %4, %9 : vector<8x256xf32>
    %c0_13 = arith.constant 0 : index
    %c2 = arith.constant 2 : index
    %c0_14 = arith.constant 0 : index
    %c0_15 = arith.constant 0 : index
    %11 = vector.load %arg1[%c0_13, %c2, %c0_14, %c0_15] : memref<1x3x8x8xbf16, #tpu.memory_space<vmem>>, vector<1x1x8x8xbf16>
    %12 = vector.shape_cast %11 : vector<1x1x8x8xbf16> to vector<8x8xbf16>
    %c2_16 = arith.constant 2 : index
    %c0_17 = arith.constant 0 : index
    %c0_18 = arith.constant 0 : index
    %13 = vector.load %arg2[%c2_16, %c0_17, %c0_18] : memref<3x8x256xbf16, #tpu.memory_space<vmem>>, vector<1x8x256xbf16>
    %14 = vector.shape_cast %13 : vector<1x8x256xbf16> to vector<8x256xbf16>
    %cst_19 = arith.constant dense<0.000000e+00> : vector<8x256xf32>
    %15 = tpu.matmul %12, %14, %cst_19 {dimension_numbers = #tpu.dot_dimension_numbers<[1], [0], [0], [1], [0, 0, 1, 1], [], []>} : vector<8x8xbf16>, vector<8x256xbf16>, vector<8x256xf32> -> vector<8x256xf32>
    %16 = arith.addf %10, %15 : vector<8x256xf32>
    %c0_20 = arith.constant 0 : index
    %c0_21 = arith.constant 0 : index
    %17 = vector.load %arg3[%c0_20, %c0_21] : memref<1x256xf32, #tpu.memory_space<vmem>>, vector<1x256xf32>
    %18 = vector.broadcast %17 : vector<1x256xf32> to vector<8x256xf32>
    %19 = arith.addf %16, %18 : vector<8x256xf32>
    %c0_22 = arith.constant 0 : index
    %c0_23 = arith.constant 0 : index
    %c0_24 = arith.constant 0 : index
    %20 = vector.load %arg4[%c0_22, %c0_23, %c0_24] : memref<1x8x256xf32, #tpu.memory_space<vmem>>, vector<1x8x256xf32>
    %21 = vector.shape_cast %20 : vector<1x8x256xf32> to vector<8x256xf32>
    %22 = vector.shape_cast %19 : vector<8x256xf32> to vector<1x8x256xf32>
    tpu.vector_store %arg4[%c0_22, %c0_23, %c0_24], %22 {strides = array<i32>} : memref<1x8x256xf32, #tpu.memory_space<vmem>>, vector<1x8x256xf32>,
    return
  }
  func.func @transform_0(%arg0: i32) -> (i32, i32, i32, i32) {
    %c0_i32 = arith.constant 0 : i32
    %c0_i32_0 = arith.constant 0 : i32
    %c0_i32_1 = arith.constant 0 : i32
    %c0_i32_2 = arith.constant 0 : i32
    return %arg0, %c0_i32, %c0_i32_0, %c0_i32_1 : i32, i32, i32, i32
  }
  func.func @transform_1(%arg0: i32) -> (i32, i32, i32) {
    %c0_i32 = arith.constant 0 : i32
    %c0_i32_0 = arith.constant 0 : i32
    %c0_i32_1 = arith.constant 0 : i32
    %c0_i32_2 = arith.constant 0 : i32
    return %c0_i32, %c0_i32_0, %c0_i32_1 : i32, i32, i32
  }
  func.func @transform_2(%arg0: i32) -> (i32, i32) {
    %c0_i32 = arith.constant 0 : i32
    %c0_i32_0 = arith.constant 0 : i32
    %c0_i32_1 = arith.constant 0 : i32
    return %c0_i32, %c0_i32_0 : i32, i32
  }
  func.func @transform_3(%arg0: i32) -> (i32, i32, i32) {
    %c0_i32 = arith.constant 0 : i32
    %c0_i32_0 = arith.constant 0 : i32
    %c0_i32_1 = arith.constant 0 : i32
    return %arg0, %c0_i32, %c0_i32_0 : i32, i32, i32
  }
}

</mosaic_0001>

<llo_original>
// kernel: tpu_custom_call.1
$region0: #{tpu_custom_call.1}
  #allocation0 [shape = 'u32[]', space=smem, size = 0x4, offset = 0x4, fixed_abs, tag = 'smem constant byte address 0x4 - core index']
  #allocation1 [shape = 'u32[144,128]{1,0:T(1,128)}', space=vmem, size = 0x12000, scoped, tag = 'internal scratch']
  %s0 = inlined_call_operand.hbm [shape: bf16[2,3,8,8], index: 0, kind: input, shape index: {}]
  %s1 = inlined_call_operand.hbm [shape: bf16[3,8,256], index: 1, kind: input, shape index: {}]
  %s2 = inlined_call_operand.vmem [shape: f32[1,256], index: 2, kind: input, shape index: {}]
  %s3 = inlined_call_operand.hbm [shape: f32[2,8,256], index: 3, kind: output, shape index: {}]
  %s4 = sld [smem:[#allocation0]]
  $region53: #{tpu_custom_call.1} parent=0
    _
  %s6 = ssub.s32 1, %s4
  %s7 = scalar_select 0, %s6, %s4
  $region1: #{tpu_custom_call.1} parent=0
    #allocation2 [shape = 'u8[12288]{0}', space=vmem, size = 0x3000, scoped, tag = 'input window, operand 0']
    #allocation3 [shape = 's32[2]{0}', space=sflag, size = 0x8, scoped, tag = 'scoped memory for tpu_custom_call.1']
    #allocation4 [shape = 's32[2]{0}', space=sflag, size = 0x8, scoped, tag = 'scoped memory for tpu_custom_call.1']
    #allocation5 [shape = 'u8[12288]{0}', space=vmem, size = 0x3000, scoped, tag = 'input window, operand 1, single buffered']
    #allocation6 [shape = 's32[1]{0}', space=sflag, size = 0x4, scoped, tag = 'scoped memory for tpu_custom_call.1']
    #allocation7 [shape = 'u8[16384]{0}', space=vmem, size = 0x4000, scoped, tag = 'output window, operand 0']
    %8 = vsyncpa [#allocation3], 0
    %s9 = scalar_lea.sflag [#allocation3], 1
    %10 = vsyncpa %s9, 0
    %11 = vsyncpa [#allocation6], 0
    %12 = vsyncpa [#allocation4], 0
    %s13 = scalar_lea.sflag [#allocation4], 1
    %14 = vsyncpa %s13, 0
    loop: start=0, step=1, limit=4
    $region2: #{tpu_custom_call.1} parent=1 // loop_pre_header
      _
    $region3: #{tpu_custom_call.1} parent=1 // loop_header
      %s16 = sphi 0, %s20
      %p17 = scmp.ge.s32.totalorder %s16, 4
      %s26 = sphi 0, %s28
      %s29 = sphi 0, %s26
      %s30 = sphi 0, %s29
      %s46 = sphi 0, %s30
      %s50 = sphi 0, %s50
      %s52 = sphi 0, %s50
      %s53 = sphi 0, %s52
      %s67 = sphi 0, %s53
      %s71 = sphi 0, %s71
      %s73 = sphi 0, %s71
      %s74 = sphi 0, %s73
      %s88 = sphi 0, %s74
      %s94 = sphi 0, %s96
      %s97 = sphi 0, %s94
      %s98 = sphi 0, %s97
      %s114 = sphi 0, %s98
    $region4: #{tpu_custom_call.1} parent=1 // loop_header_branch
      %19 = sbr.rel (%p17) target = $region8
    $region5: #{tpu_custom_call.1} parent=1 // loop_body
      %s21 = ssub.s32 %s16, 1
      %s22 = ssub.s32 %s16, 2
      %s23 = sadd.s32 %s16, 1
      %s24 = ssub.s32 %s16, %s23
      %p25 = scmp.eq.s32.totalorder %s24, 0
      %s27 = sadd.s32 %s26, 1
      %s28 = scalar_select %p25, %s26, %s27
      %p31 = pneg %p25
      %p32 = scmp.eq.s32.totalorder %s16, 1
      %p33 = por %p31, %p32
      %p34 = scmp.ne.s32.totalorder %s26, %s29
      %p35 = scmp.eq.s32.totalorder %s16, 0
      %p36 = por %p34, %p35
      %p37 = scmp.ne.s32.totalorder %s26, %s29
      %p38 = scmp.eq.s32.totalorder %s21, 1
      %p39 = por %p37, %p38
      %p40 = scmp.ne.s32.totalorder %s29, %s30
      %p41 = scmp.eq.s32.totalorder %s21, 0
      %p42 = por %p40, %p41
      %p43 = scmp.ne.s32.totalorder %s29, %s30
      %p44 = scmp.eq.s32.totalorder %s22, 1
      %p45 = por %p43, %p44
      %p47 = scmp.ne.s32.totalorder %s30, %s46
      %p48 = scmp.eq.s32.totalorder %s22, 0
      %p49 = por %p47, %p48
      %s51 = sadd.s32 %s50, 1
      %p54 = scmp.eq.s32.totalorder %s16, 1
      %p55 = scmp.ne.s32.totalorder %s50, %s52
      %p56 = scmp.eq.s32.totalorder %s16, 0
      %p57 = por %p55, %p56
      %p58 = scmp.ne.s32.totalorder %s50, %s52
      %p59 = scmp.eq.s32.totalorder %s21, 1
      %p60 = por %p58, %p59
      %p61 = scmp.ne.s32.totalorder %s52, %s53
      %p62 = scmp.eq.s32.totalorder %s21, 0
      %p63 = por %p61, %p62
      %p64 = scmp.ne.s32.totalorder %s52, %s53
      %p65 = scmp.eq.s32.totalorder %s22, 1
      %p66 = por %p64, %p65
      %p68 = scmp.ne.s32.totalorder %s53, %s67
      %p69 = scmp.eq.s32.totalorder %s22, 0
      %p70 = por %p68, %p69
      %s72 = sadd.s32 %s71, 1
      %p75 = scmp.eq.s32.totalorder %s16, 1
      %p76 = scmp.ne.s32.totalorder %s71, %s73
      %p77 = scmp.eq.s32.totalorder %s16, 0
      %p78 = por %p76, %p77
      %p79 = scmp.ne.s32.totalorder %s71, %s73
      %p80 = scmp.eq.s32.totalorder %s21, 1
      %p81 = por %p79, %p80
      %p82 = scmp.ne.s32.totalorder %s73, %s74
      %p83 = scmp.eq.s32.totalorder %s21, 0
      %p84 = por %p82, %p83
      %p85 = scmp.ne.s32.totalorder %s73, %s74
      %p86 = scmp.eq.s32.totalorder %s22, 1
      %p87 = por %p85, %p86
      %p89 = scmp.ne.s32.totalorder %s74, %s88
      %p90 = scmp.eq.s32.totalorder %s22, 0
      %p91 = por %p89, %p90
      %s92 = ssub.s32 %s16, %s23
      %p93 = scmp.eq.s32.totalorder %s92, 0
      %s95 = sadd.s32 %s94, 1
      %s96 = scalar_select %p93, %s94, %s95
      %p99 = pneg %p93
      %p100 = scmp.eq.s32.totalorder %s16, 1
      %p101 = por %p99, %p100
      %p102 = scmp.ne.s32.totalorder %s94, %s97
      %p103 = scmp.eq.s32.totalorder %s16, 0
      %p104 = por %p102, %p103
      %p105 = scmp.ne.s32.totalorder %s94, %s97
      %p106 = scmp.eq.s32.totalorder %s21, 1
      %p107 = por %p105, %p106
      %p108 = scmp.ne.s32.totalorder %s97, %s98
      %p109 = scmp.eq.s32.totalorder %s21, 0
      %p110 = por %p108, %p109
      %p111 = scmp.ne.s32.totalorder %s97, %s98
      %p112 = scmp.eq.s32.totalorder %s22, 1
      %p113 = por %p111, %p112
      %p115 = scmp.ne.s32.totalorder %s98, %s114
      %p116 = scmp.eq.s32.totalorder %s22, 0
      %p117 = por %p115, %p116
      %p118 = scmp.le.s32.totalorder 1, %s16
      %p119 = scmp.lt.s32.totalorder %s16, 3
      %p120 = pnand %p118, %p119
      %p121 = pneg %p120
      // Predicated region
      $region9: #{tpu_custom_call.1} parent=5 // pred_check
        _
      $region10: #{tpu_custom_call.1} parent=5 // pred_check_branch
        %123 = sbr.rel (%p120) target = $region12
      $region11: #{tpu_custom_call.1} parent=5 // pred_region
        %s124 = ssub.s32 %s16, 1
        // Predicated region
        $region13: #{tpu_custom_call.1} parent=11 // pred_check
          %p125 = pneg %p63
        $region14: #{tpu_custom_call.1} parent=11 // pred_check_branch
          %127 = sbr.rel (%p125) target = $region16
        $region15: #{tpu_custom_call.1} parent=11 // pred_region
          %s129 = ssub.s32 384, 384
          %130 = vsyncadd [#allocation6], %s129
          %s131 = sshll.u32 [#allocation5], 4
          %s132 = int_to_ptr.vmem [resolvable:$true] %s131
          %137 = dma.hbm_to_vmem [thread:$0]  %s1, 384, %s132, [#allocation6], 128, 128, 8
        $region16: #{tpu_custom_call.1} parent=11 // pred_fallthru
          _
        // Predicated region
        $region17: #{tpu_custom_call.1} parent=11 // pred_check
          %p138 = pneg %p84
        $region18: #{tpu_custom_call.1} parent=11 // pred_check_branch
          %140 = sbr.rel (%p138) target = $region20
        $region19: #{tpu_custom_call.1} parent=11 // pred_region
          _
        $region20: #{tpu_custom_call.1} parent=11 // pred_fallthru
          _
      $region12: #{tpu_custom_call.1} parent=5 // pred_fallthru
        _
      %p141 = scmp.lt.s32.totalorder %s16, 2
      // Predicated region
      $region21: #{tpu_custom_call.1} parent=5 // pred_check
        %p142 = pneg %p141
      $region22: #{tpu_custom_call.1} parent=5 // pred_check_branch
        %144 = sbr.rel (%p142) target = $region24
      $region23: #{tpu_custom_call.1} parent=5 // pred_region
        // Predicated region
        $region25: #{tpu_custom_call.1} parent=23 // pred_check
          %p145 = pneg %p36
        $region26: #{tpu_custom_call.1} parent=23 // pred_check_branch
          %147 = sbr.rel (%p145) target = $region28
        $region27: #{tpu_custom_call.1} parent=23 // pred_region
          %s148 = sand.u32 %s26, 1
          %s149 = scalar_lea.sflag [#allocation3], %s148
          %s150 = sand.u32 %s26, 1
          %s151 = smul.addr %s150, 12
          %s152 = scalar_lea.vmem [#allocation2], %s151
          %s154 = ssub.s32 192, 192
          %155 = vsyncadd %s149, %s154
          %s156 = smul.addr %s16, 3
          %s157 = smul.addr %s156, 64
          %s158 = scalar_lea.hbm %s0, %s157
          %s159 = sshll.u32 %s152, 4
          %s160 = int_to_ptr.vmem [resolvable:$true] %s159
          %165 = dma.hbm_to_vmem [thread:$0]  %s158, 192, %s160, %s149, 64, 64, 4
        $region28: #{tpu_custom_call.1} parent=23 // pred_fallthru
          _
      $region24: #{tpu_custom_call.1} parent=5 // pred_fallthru
        _
      %p166 = scmp.le.s32.totalorder 1, %s16
      %p167 = scmp.lt.s32.totalorder %s16, 3
      %p168 = pnand %p166, %p167
      %p169 = pneg %p168
      // Predicated region
      $region29: #{tpu_custom_call.1} parent=5 // pred_check
        _
      $region30: #{tpu_custom_call.1} parent=5 // pred_check_branch
        %171 = sbr.rel (%p168) target = $region32
      $region31: #{tpu_custom_call.1} parent=5 // pred_region
        %s172 = ssub.s32 %s16, 1
        %s173 = sand.u32 %s29, 1
        %s174 = scalar_lea.sflag [#allocation3], %s173
        %s175 = sand.u32 %s29, 1
        %s176 = smul.addr %s175, 12
        %s177 = scalar_lea.vmem [#allocation2], %s176
        // Predicated region
        $region33: #{tpu_custom_call.1} parent=31 // pred_check
          %p178 = pneg %p42
        $region34: #{tpu_custom_call.1} parent=31 // pred_check_branch
          %180 = sbr.rel (%p178) target = $region36
        $region35: #{tpu_custom_call.1} parent=31 // pred_region
          %181 = dma.done %s174, 192
        $region36: #{tpu_custom_call.1} parent=31 // pred_fallthru
          _
        // Predicated region
        $region37: #{tpu_custom_call.1} parent=31 // pred_check
          %p182 = pneg %p63
        $region38: #{tpu_custom_call.1} parent=31 // pred_check_branch
          %184 = sbr.rel (%p182) target = $region40
        $region39: #{tpu_custom_call.1} parent=31 // pred_region
          %185 = dma.done [#allocation6], 384
        $region40: #{tpu_custom_call.1} parent=31 // pred_fallthru
          _
        %s186 = sand.u32 %s29, 1
        %s187 = scalar_lea.sflag [#allocation3], %s186
        %s188 = sand.u32 %s29, 1
        %s189 = smul.addr %s188, 12
        %s190 = scalar_lea.vmem [#allocation2], %s189
        %p191 = pneg %p42
        %p192 = pneg %p39
        %p193 = pneg %p63
        %p194 = pneg %p60
        %p195 = pneg %p84
        %p196 = pneg %p81
        %p197 = pneg %p110
        %p198 = pneg %p107
        %s199 = sand.u32 %s97, 1
        %s200 = scalar_lea.sflag [#allocation4], %s199
        %s201 = sand.u32 %s97, 1
        %s202 = smul.addr %s201, 16
        %s203 = scalar_lea.vmem [#allocation7], %s202
        %v205 = vld [vmem:[%s177] sm:$0xf]
        %v206 = vld [vmem:[#allocation5] sm:$0xff]
        %s207 = scalar_lea.vmem %s177, 4 [#allocation2]
        %v208 = vld [vmem:[%s207] sm:$0xf]
        %s209 = scalar_lea.vmem [#allocation5], 8
        %v210 = vld [vmem:[%s209] sm:$0xff]
        %v212 = vunpack.c.l.b16 %v210
        %v213 = vunpack.c.h.b16 %v210
        %v214 = vpack.c.b16 %v212, %v212
        %v215 = vpack.c.b16 %v213, %v213
        %vm216 = vcmask 64512
        %v218 = vsel %vm216, %v208, 0
        %vm220 = vcmask 1043456
        %v222 = vsel %vm220, %v214, 0
        %v225 = vsel %vm220, %v215, 0
        %227 = vmatprep.subr.bf16.mxu0 %v225
        %228 = vmatpush1.bf16.msra.mxu0 %v222
        %229 = vmatprep.subr.bf16.mxu0 0
        %230 = vmatpush1.bf16.msra.mxu0 0
        %231 = vmatprep.subr.bf16.mxu0 0
        %232 = vmatpush1.bf16.msra.mxu0 0
        %233 = vmatprep.subr.bf16.mxu0 0
        %234 = vmatpush1.bf16.msra.mxu0 0
        %235 = vmatprep.subr.bf16.mxu0 0
        %236 = vmatpush1.bf16.msra.mxu0 0
        %237 = vmatprep.subr.bf16.mxu0 0
        %238 = vmatpush1.bf16.msra.mxu0 0
        %239 = vmatprep.subr.bf16.mxu0 0
        %240 = vmatpush1.bf16.msra.mxu0 0
        %241 = vmatprep.subr.bf16.mxu0 0
        %242 = vmatpush1.bf16.msra.mxu0 0
        %243 = vmatprep.subr.bf16.mxu0 0
        %244 = vmatpush1.bf16.msra.mxu0 0
        %245 = vmatprep.subr.bf16.mxu0 0
        %246 = vmatpush1.bf16.msra.mxu0 0
        %247 = vmatprep.subr.bf16.mxu0 0
        %248 = vmatpush1.bf16.msra.mxu0 0
        %249 = vmatprep.subr.bf16.mxu0 0
        %250 = vmatpush1.bf16.msra.mxu0 0
        %251 = vmatprep.subr.bf16.mxu0 0
        %252 = vmatpush1.bf16.msra.mxu0 0
        %253 = vmatprep.subr.bf16.mxu0 0
        %254 = vmatpush1.bf16.msra.mxu0 0
        %255 = vmatprep.subr.bf16.mxu0 0
        %256 = vmatpush1.bf16.msra.mxu0 0
        %257 = vmatprep.subr.bf16.mxu0 0
        %258 = vmatpush1.bf16.msra.mxu0 0
        %259 = vmatprep.mubr.bf16.mxu0 0
        %260 = vmatmul.mubr.bf16.gmra.mrb[0].mxu0 %v218
        %v261 = vpop.f32.mrb[0].mxu0
        %v262 = vadd.f32 0.0, %v261
        %v263 = vpop.f32.mrb[0].mxu0
        %v264 = vadd.f32 0.0, %v263
        %v265 = vpop.f32.mrb[0].mxu0
        %v266 = vpop.f32.mrb[0].mxu0
        %267 = vdwg.mxu0
        %v269 = vunpack.c.l.b16 %v206
        %v270 = vunpack.c.h.b16 %v206
        %v271 = vpack.c.b16 %v269, %v269
        %v272 = vpack.c.b16 %v270, %v270
        %v274 = vsel %vm216, %v205, 0
        %v277 = vsel %vm220, %v271, 0
        %v280 = vsel %vm220, %v272, 0
        %282 = vmatprep.subr.bf16.mxu0 %v280
        %283 = vmatpush1.bf16.msra.mxu0 %v277
        %284 = vmatprep.subr.bf16.mxu0 0
        %285 = vmatpush1.bf16.msra.mxu0 0
        %286 = vmatprep.subr.bf16.mxu0 0
        %287 = vmatpush1.bf16.msra.mxu0 0
        %288 = vmatprep.subr.bf16.mxu0 0
        %289 = vmatpush1.bf16.msra.mxu0 0
        %290 = vmatprep.subr.bf16.mxu0 0
        %291 = vmatpush1.bf16.msra.mxu0 0
        %292 = vmatprep.subr.bf16.mxu0 0
        %293 = vmatpush1.bf16.msra.mxu0 0
        %294 = vmatprep.subr.bf16.mxu0 0
        %295 = vmatpush1.bf16.msra.mxu0 0
        %296 = vmatprep.subr.bf16.mxu0 0
        %297 = vmatpush1.bf16.msra.mxu0 0
        %298 = vmatprep.subr.bf16.mxu0 0
        %299 = vmatpush1.bf16.msra.mxu0 0
        %300 = vmatprep.subr.bf16.mxu0 0
        %301 = vmatpush1.bf16.msra.mxu0 0
        %302 = vmatprep.subr.bf16.mxu0 0
        %303 = vmatpush1.bf16.msra.mxu0 0
        %304 = vmatprep.subr.bf16.mxu0 0
        %305 = vmatpush1.bf16.msra.mxu0 0
        %306 = vmatprep.subr.bf16.mxu0 0
        %307 = vmatpush1.bf16.msra.mxu0 0
        %308 = vmatprep.subr.bf16.mxu0 0
        %309 = vmatpush1.bf16.msra.mxu0 0
        %310 = vmatprep.subr.bf16.mxu0 0
        %311 = vmatpush1.bf16.msra.mxu0 0
        %312 = vmatprep.subr.bf16.mxu0 0
        %313 = vmatpush1.bf16.msra.mxu0 0
        %314 = vmatprep.mubr.bf16.mxu0 0
        %315 = vmatmul.mubr.bf16.gmra.mrb[0].mxu0 %v274
        %v316 = vpop.f32.mrb[0].mxu0
        %v317 = vadd.f32 %v262, %v316
        %v318 = vpop.f32.mrb[0].mxu0
        %v319 = vadd.f32 %v264, %v318
        %v320 = vpop.f32.mrb[0].mxu0
        %v321 = vpop.f32.mrb[0].mxu0
        %322 = vdwg.mxu0
        %s323 = scalar_lea.vmem %s177, 8 [#allocation2]
        %v324 = vld [vmem:[%s323] sm:$0xf]
        %s325 = scalar_lea.vmem [#allocation5], 16
        %v326 = vld [vmem:[%s325] sm:$0xff]
        %v328 = vunpack.c.l.b16 %v326
        %v329 = vunpack.c.h.b16 %v326
        %v330 = vpack.c.b16 %v328, %v328
        %v331 = vpack.c.b16 %v329, %v329
        %v333 = vsel %vm216, %v324, 0
        %v336 = vsel %vm220, %v330, 0
        %v339 = vsel %vm220, %v331, 0
        %341 = vmatprep.subr.bf16.mxu0 %v339
        %342 = vmatpush1.bf16.msra.mxu0 %v336
        %343 = vmatprep.subr.bf16.mxu0 0
        %344 = vmatpush1.bf16.msra.mxu0 0
        %345 = vmatprep.subr.bf16.mxu0 0
        %346 = vmatpush1.bf16.msra.mxu0 0
        %347 = vmatprep.subr.bf16.mxu0 0
        %348 = vmatpush1.bf16.msra.mxu0 0
        %349 = vmatprep.subr.bf16.mxu0 0
        %350 = vmatpush1.bf16.msra.mxu0 0
        %351 = vmatprep.subr.bf16.mxu0 0
        %352 = vmatpush1.bf16.msra.mxu0 0
        %353 = vmatprep.subr.bf16.mxu0 0
        %354 = vmatpush1.bf16.msra.mxu0 0
        %355 = vmatprep.subr.bf16.mxu0 0
        %356 = vmatpush1.bf16.msra.mxu0 0
        %357 = vmatprep.subr.bf16.mxu0 0
        %358 = vmatpush1.bf16.msra.mxu0 0
        %359 = vmatprep.subr.bf16.mxu0 0
        %360 = vmatpush1.bf16.msra.mxu0 0
        %361 = vmatprep.subr.bf16.mxu0 0
        %362 = vmatpush1.bf16.msra.mxu0 0
        %363 = vmatprep.subr.bf16.mxu0 0
        %364 = vmatpush1.bf16.msra.mxu0 0
        %365 = vmatprep.subr.bf16.mxu0 0
        %366 = vmatpush1.bf16.msra.mxu0 0
        %367 = vmatprep.subr.bf16.mxu0 0
        %368 = vmatpush1.bf16.msra.mxu0 0
        %369 = vmatprep.subr.bf16.mxu0 0
        %370 = vmatpush1.bf16.msra.mxu0 0
        %371 = vmatprep.subr.bf16.mxu0 0
        %372 = vmatpush1.bf16.msra.mxu0 0
        %373 = vmatprep.mubr.bf16.mxu0 0
        %374 = vmatmul.mubr.bf16.gmra.mrb[0].mxu0 %v333
        %v375 = vpop.f32.mrb[0].mxu0
        %v376 = vadd.f32 0.0, %v375
        %v377 = vpop.f32.mrb[0].mxu0
        %v378 = vadd.f32 0.0, %v377
        %v379 = vpop.f32.mrb[0].mxu0
        %v380 = vpop.f32.mrb[0].mxu0
        %381 = vdwg.mxu0
        %v382 = vadd.f32 %v317, %v376
        %v383 = vadd.f32 %v319, %v378
        %v384 = vld [vmem:[%s2] sm:$0x3]
        %v386 = vlaneseq
        %v387 = vshrl.u32 %v386, 7
        %v388 = vsub.s32 0, %v387
        %v389 = vrot.slane %v384, %v388
        %v390 = vlaneseq
        %v391 = vshrl.u32 %v390, 7
        %v392 = vsub.s32 1, %v391
        %v393 = vrot.slane %v384, %v392
        %v396 = vadd.f32 %v382, %v389
        %v397 = vadd.f32 %v383, %v393
        %398 = vst [vmem:[%s203] sm:$0xff] %v396
        %399 = vst [vmem:[%s203 + $0x8] sm:$0xff] %v397
        %s400 = sand.u32 %s97, 1
        %s401 = scalar_lea.sflag [#allocation4], %s400
        %s402 = sand.u32 %s97, 1
        %s403 = smul.addr %s402, 16
        %s404 = scalar_lea.vmem [#allocation7], %s403
        // Predicated region
        $region41: #{tpu_custom_call.1} parent=31 // pred_check
          %p405 = pneg %p107
        $region42: #{tpu_custom_call.1} parent=31 // pred_check_branch
          %407 = sbr.rel (%p405) target = $region44
        $region43: #{tpu_custom_call.1} parent=31 // pred_region
          %s409 = ssub.s32 256, 256
          %410 = vsyncadd %s401, %s409
          %s411 = smul.addr %s21, 2
          %s412 = smul.addr %s411, 128
          %s413 = scalar_lea.hbm %s3, %s412
          %s415 = sshll.u32 %s404, 4
          %s416 = int_to_ptr.vmem [resolvable:$true] %s415
          %418 = dma.vmem_to_hbm [thread:$0]  %s416, 256, %s413, %s401
        $region44: #{tpu_custom_call.1} parent=31 // pred_fallthru
          _
      $region32: #{tpu_custom_call.1} parent=5 // pred_fallthru
        _
      %p419 = scmp.le.s32.totalorder 2, %s16
      // Predicated region
      $region45: #{tpu_custom_call.1} parent=5 // pred_check
        %p420 = pneg %p419
      $region46: #{tpu_custom_call.1} parent=5 // pred_check_branch
        %422 = sbr.rel (%p420) target = $region48
      $region47: #{tpu_custom_call.1} parent=5 // pred_region
        %s423 = ssub.s32 %s16, 2
        // Predicated region
        $region49: #{tpu_custom_call.1} parent=47 // pred_check
          %p424 = pneg %p113
        $region50: #{tpu_custom_call.1} parent=47 // pred_check_branch
          %426 = sbr.rel (%p424) target = $region52
        $region51: #{tpu_custom_call.1} parent=47 // pred_region
          %s427 = sand.u32 %s98, 1
          %s428 = scalar_lea.sflag [#allocation4], %s427
          %s429 = sand.u32 %s98, 1
          %s430 = smul.addr %s429, 16
          %s431 = scalar_lea.vmem [#allocation7], %s430
          %432 = dma.done %s428, 256
        $region52: #{tpu_custom_call.1} parent=47 // pred_fallthru
          _
      $region48: #{tpu_custom_call.1} parent=5 // pred_fallthru
        _
    $region6: #{tpu_custom_call.1} parent=1 // loop_footer
      %s20 = sadd.s32 1, %s16
    $region7: #{tpu_custom_call.1} parent=1 // loop_footer_branch
      %15 = sbr.rel target = $region3
    $region8: #{tpu_custom_call.1} parent=1 // loop_exit
      _
    %433 = vsyncpa [#allocation3], 1
    %s434 = scalar_lea.sflag [#allocation3], 1
    %435 = vsyncpa %s434, 1
    %436 = vsyncpa [#allocation6], 1
    %437 = vsyncpa [#allocation4], 1
    %s438 = scalar_lea.sflag [#allocation4], 1
    %439 = vsyncpa %s438, 1

</llo_original>
